<compile_context>
chip_gen: v5e
topology: v5e:2x2
jax: 0.10.0
libtpu: 0.0.40
codegen_flags: <defaults>
</compile_context>

<pallas_src>
import functools

import jax
import jax.numpy as jnp
from jax.experimental import pallas as pl
from jax.experimental.pallas import tpu as pltpu


def _round_up(x, m):
    return (x + m - 1) // m * m


def _vmem_limit_bytes():
    """Per-generation VMEM budget: ~75% of physical, capped at 100 MiB.
    v5e/v6e (128 MiB) -> 96 MiB, v7x (64 MiB/TC) -> 48 MiB, fallback 48 MiB."""
    try:
        cap = int(pltpu.get_tpu_info().vmem_capacity_bytes)
    except Exception:
        cap = 64 * 1024 * 1024
    return min(cap * 3 // 4, 100 * 1024 * 1024)


def deep_crossing_kernel(x_ref, w1_ref, b1_ref, w2_ref, b2_ref,
                         wf_ref, bf_ref, o_ref, *, num_res):
    """
    x_ref : [TM, D]    bf16  batch tile of flattened embeddings (VMEM)
    w1_ref: [R, D, D]  bf16  fc1 weights (x @ w layout), VMEM-resident
    b1_ref: [R, 1, D]  f32
    w2_ref: [R, D, D]  bf16
    b2_ref: [R, 1, D]  f32
    wf_ref: [D, 1]     bf16  final linear weight, pre-transposed (h @ wf^T)
    bf_ref: [1, 1]     f32   final bias (SMEM scalar)
    o_ref : [TM, 1]    f32   sigmoid output
    """
    # Master activation kept in f32 so bias add / skip-add / ReLU stay f32.
    # TODO(synk): on v6e/v7x, keep the inter-unit activation in bf16 (packed
    # VPU) to cut the VALU-bound per-unit chain ~25-35%; not valid on v5e.
    h = x_ref[...].astype(jnp.float32)

    # num_res is static -> unrolled Python loop; weights stay VMEM-resident.
    for r in range(num_res):
        x_in = h
        l1 = jnp.dot(x_in.astype(jnp.bfloat16), w1_ref[r],
                     preferred_element_type=jnp.float32) + b1_ref[r]
        l1 = jnp.maximum(l1, 0.0)
        l2 = jnp.dot(l1.astype(jnp.bfloat16), w2_ref[r],
                     preferred_element_type=jnp.float32) + b2_ref[r]
        h = jnp.maximum(l2 + x_in, 0.0)      # residual add + ReLU in f32

    # Final Linear(D,1): canonical (M=TM, K=D, N=1) matmul against the
    # pre-transposed weight column -> no hidden transpose of h.  The [TM,1]
    # store is a handful of masked vst's per tile (TM values), negligible.
    logit = jnp.dot(h.astype(jnp.bfloat16), wf_ref[...],
                    preferred_element_type=jnp.float32)          # [TM, 1]
    o_ref[...] = jax.nn.sigmoid(logit + bf_ref[0, 0]).astype(o_ref.dtype)


def deep_crossing_forward(x_idx, params, *, num_res, block_b=1024):
    """x_idx: [B, F] int32 field indices; returns [B, 1] float32 probabilities."""
    emb_table = params["emb_table"]     # [sum(field_dims), E] bf16
    offsets = params["offsets"]         # [F] int32
    B, F = x_idx.shape
    E = emb_table.shape[1]
    D = F * E
    R = num_res

    # ---- batch tiling: multiple of 16 (bf16 sublane packing); >= 2 tiles so
    # ("parallel",) can occupy both v7x TensorCores.
    tm = max(16, min(block_b, _round_up(B, 16)))
    tm = _round_up(tm, 16)
    b_pad = _round_up(B, tm)
    if b_pad // tm == 1 and tm > 16:
        tm = _round_up(pl.cdiv(b_pad, 2), 16)
        b_pad = _round_up(B, tm)
    n_tiles = b_pad // tm

    # ---- glue: pad the (tiny) index array, then gather -> padded rows are
    # well-defined (row 0 of the table) and there is no extra HBM pad copy of
    # the dense activation.
    # TODO(synk): fuse the gather into the kernel (scalar-prefetched indices +
    # in-kernel DMA row gather) once per-sample rows (D*2B) are >= ~512 B.
    flat_idx = x_idx + offsets[None, :]                       # [B, F] int32
    if b_pad != B:
        flat_idx = jnp.pad(flat_idx, ((0, b_pad - B), (0, 0)))
    x_dense = jnp.take(emb_table, flat_idx, axis=0).reshape(b_pad, D)   # bf16

    w1, b1 = params["w1"], params["b1"]       # [R,D,D] bf16 / [R,1,D] f32
    w2, b2 = params["w2"], params["b2"]
    wf_t = params["wf"].reshape(D, 1)         # [D,1] bf16 (pre-transposed)
    bf = params["bf"]                         # [1,1] f32

    # ---- lane-align D to 128 only when the activation HBM bloat is small
    # (<= 25%); at tiny D (demo D=16) padding would multiply the dominant
    # activation traffic, so we keep the ragged (full-extent) block instead.
    Dp = _round_up(D, 128)
    if Dp != D and Dp * 4 <= D * 5:
        pad = Dp - D
        w1 = jnp.pad(w1, ((0, 0), (0, pad), (0, pad)))
        w2 = jnp.pad(w2, ((0, 0), (0, pad), (0, pad)))
        b1 = jnp.pad(b1, ((0, 0), (0, 0), (0, pad)))
        b2 = jnp.pad(b2, ((0, 0), (0, 0), (0, pad)))
        wf_t = jnp.pad(wf_t, ((0, pad), (0, 0)))
        x_dense = jnp.pad(x_dense, ((0, 0), (0, pad)))  # fuses with the gather
        Dk = Dp
    else:
        Dk = D

    # ---- VMEM budgets.
    vmem_limit = _vmem_limit_bytes()
    resident_weight_bytes = int(w1.size + w2.size + wf_t.size) * 2 \
        + int(b1.size + b2.size) * 4
    if resident_weight_bytes > vmem_limit // 2:
        # TODO(synk): stream w1[r]/w2[r] per residual unit (pltpu.emit_pipeline
        # or an 'arbitrary' grid axis over r with h carried in VMEM scratch)
        # instead of keeping every unit resident; needed for large R*D^2 on
        # v7x's 64 MiB VMEM.
        raise NotImplementedError(
            "resident weights (%d B) exceed VMEM budget (%d B); weight "
            "streaming path not implemented" % (resident_weight_bytes, vmem_limit))

    flops = 2 * b_pad * Dk * (2 * Dk * R + 1)
    bytes_accessed = sum(int(a.size) * a.dtype.itemsize
                         for a in (x_dense, w1, b1, w2, b2, wf_t, bf)) + b_pad * 4

    kernel = functools.partial(deep_crossing_kernel, num_res=R)
    resident = pl.Buffered(1)   # constant index_map -> DMA once, single buffer
    out = pl.pallas_call(
        kernel,
        out_shape=jax.ShapeDtypeStruct((b_pad, 1), jnp.float32),
        grid_spec=pltpu.PrefetchScalarGridSpec(
            num_scalar_prefetch=0,
            grid=(n_tiles,),
            in_specs=[
                pl.BlockSpec((tm, Dk), lambda i: (i, 0)),             # x tile
                pl.BlockSpec((R, Dk, Dk), lambda i: (0, 0, 0),
                             pipeline_mode=resident),                 # w1
                pl.BlockSpec((R, 1, Dk), lambda i: (0, 0, 0),
                             pipeline_mode=resident),                 # b1
                pl.BlockSpec((R, Dk, Dk), lambda i: (0, 0, 0),
                             pipeline_mode=resident),                 # w2
                pl.BlockSpec((R, 1, Dk), lambda i: (0, 0, 0),
                             pipeline_mode=resident),                 # b2
                pl.BlockSpec((Dk, 1), lambda i: (0, 0),
                             pipeline_mode=resident),                 # wf^T
                pl.BlockSpec((1, 1), lambda i: (0, 0),
                             memory_space=pltpu.MemorySpace.SMEM),    # bf scalar
            ],
            out_specs=pl.BlockSpec((tm, 1), lambda i: (i, 0)),
        ),
        compiler_params=pltpu.CompilerParams(
            dimension_semantics=("parallel",),
            vmem_limit_bytes=vmem_limit,
        ),
        cost_estimate=pl.CostEstimate(
            flops=flops, transcendentals=b_pad, bytes_accessed=bytes_accessed),
    )(x_dense, w1, b1, w2, b2, wf_t, bf)

    return out[:B]


def init_params(key, field_dims, embed_dim, num_res):
    """Deterministic synthetic init mimicking PyTorch Linear/Embedding defaults.
    MXU operands (emb table, w1, w2, wf) are stored bf16; biases stay f32.
    TODO(synk): optional fp8 weight storage on v7x (accuracy-gated)."""
    F = len(field_dims)
    D = F * embed_dim
    total = int(sum(field_dims))
    keys = jax.random.split(key, 8)

    emb_table = (0.1 * jax.random.normal(keys[0], (total, embed_dim),
                                         jnp.float32)).astype(jnp.bfloat16)
    offsets = jnp.array([0] + list(jnp.cumsum(jnp.array(field_dims))[:-1]),
                        dtype=jnp.int32)

    bound = 1.0 / jnp.sqrt(jnp.float32(D))
    w1 = jax.random.uniform(keys[1], (num_res, D, D), jnp.float32,
                            -bound, bound).astype(jnp.bfloat16)
    b1 = jax.random.uniform(keys[2], (num_res, 1, D), jnp.float32, -bound, bound)
    w2 = jax.random.uniform(keys[3], (num_res, D, D), jnp.float32,
                            -bound, bound).astype(jnp.bfloat16)
    b2 = jax.random.uniform(keys[4], (num_res, 1, D), jnp.float32, -bound, bound)
    wf = jax.random.uniform(keys[5], (1, D), jnp.float32,
                            -bound, bound).astype(jnp.bfloat16)
    bf = jax.random.uniform(keys[6], (1, 1), jnp.float32, -bound, bound)

    return {
        "emb_table": emb_table, "offsets": offsets,
        "w1": w1, "b1": b1, "w2": w2, "b2": b2, "wf": wf, "bf": bf,
    }


def reference_forward(x_idx, params, *, num_res):
    """Pure-JAX reference mirroring the PyTorch module (same bf16 MXU-operand /
    f32-accumulation numerics as the kernel)."""
    emb = jnp.take(params["emb_table"], x_idx + params["offsets"][None, :], axis=0)
    h = emb.reshape(x_idx.shape[0], -1).astype(jnp.float32)
    for r in range(num_res):
        x_in = h
        l1 = jnp.dot(x_in.astype(jnp.bfloat16), params["w1"][r],
                     preferred_element_type=jnp.float32) + params["b1"][r]
        l1 = jnp.maximum(l1, 0.0)
        l2 = jnp.dot(l1.astype(jnp.bfloat16), params["w2"][r],
                     preferred_element_type=jnp.float32) + params["b2"][r]
        h = jnp.maximum(l2 + x_in, 0.0)
    logit = jnp.dot(h.astype(jnp.bfloat16), params["wf"].T,
                    preferred_element_type=jnp.float32) + params["bf"]
    return jax.nn.sigmoid(logit)


if __name__ == "__main__":
    key = jax.random.PRNGKey(0)

    # (field_dims, embed_dim, num_res, batch, block_b)
    configs = [
        # D = 16 (ragged, no lane pad); block_b=8 -> tm=16, 2 grid steps, batch pad.
        ([10, 20, 30, 40], 4, 2, 20, 8),
        # D = 120 -> lane-padded to 128; default block_b -> exercises the
        # split-into->=2-tiles path (tm=32, 2 tiles).
        ([7] * 15, 8, 3, 37, 1024),
    ]

    for ci, (field_dims, embed_dim, num_res, batch, block_b) in enumerate(configs):
        pkey, xkey = jax.random.split(jax.random.fold_in(key, ci))
        params = init_params(pkey, field_dims, embed_dim, num_res)

        maxes = jnp.array(field_dims, dtype=jnp.int32)
        x_idx = (jax.random.randint(xkey, (batch, len(field_dims)), 0, 1 << 30)
                 % maxes[None, :]).astype(jnp.int32)

        out = deep_crossing_forward(x_idx, params, num_res=num_res,
                                    block_b=block_b)
        out = jax.block_until_ready(out)

        ref = reference_forward(x_idx, params, num_res=num_res)
        assert out.shape == (batch, 1), out.shape
        assert jnp.allclose(out, ref, atol=5e-4, rtol=5e-4), (ci, out, ref)

    print("KERNEL_OK")
</pallas_src>

<mosaic_0001>
module attributes {stable_mosaic.version = 11 : i64} {
  func.func @deep_crossing_kernel(%arg0: i32, %arg1: memref<16x16xbf16, #tpu.memory_space<vmem>>, %arg2: memref<2x16x16xbf16, #tpu.memory_space<vmem>>, %arg3: memref<2x1x16xf32, #tpu.memory_space<vmem>>, %arg4: memref<2x16x16xbf16, #tpu.memory_space<vmem>>, %arg5: memref<2x1x16xf32, #tpu.memory_space<vmem>>, %arg6: memref<16x1xbf16, #tpu.memory_space<vmem>>, %arg7: memref<1x1xf32, #tpu.memory_space<smem>>, %arg8: memref<16x1xf32, #tpu.memory_space<vmem>>) attributes {dimension_semantics = [#tpu.dimension_semantics<parallel>], iteration_bounds = array<i64: 2>, scalar_prefetch = 0 : i64, scratch_operands = 0 : i64, tpu.core_type = #tpu.core_type<tc>, window_params = [{transform_indices = @transform_0, window_bounds = array<i64: 16, 16>}, {pipeline_mode = #tpu.pipeline_mode<synchronous>, transform_indices = @transform_1, window_bounds = array<i64: 2, 16, 16>}, {pipeline_mode = #tpu.pipeline_mode<synchronous>, transform_indices = @transform_2, window_bounds = array<i64: 2, 1, 16>}, {pipeline_mode = #tpu.pipeline_mode<synchronous>, transform_indices = @transform_3, window_bounds = array<i64: 2, 16, 16>}, {pipeline_mode = #tpu.pipeline_mode<synchronous>, transform_indices = @transform_4, window_bounds = array<i64: 2, 1, 16>}, {pipeline_mode = #tpu.pipeline_mode<synchronous>, transform_indices = @transform_5, window_bounds = array<i64: 16, 1>}, {transform_indices = @transform_6, window_bounds = array<i64: 1, 1>}, {transform_indices = @transform_7, window_bounds = array<i64: 16, 1>}]} {
    %c0 = arith.constant 0 : index
    %c0_0 = arith.constant 0 : index
    %0 = vector.load %arg1[%c0, %c0_0] : memref<16x16xbf16, #tpu.memory_space<vmem>>, vector<16x16xbf16>
    %1 = arith.extf %0 : vector<16x16xbf16> to vector<16x16xf32>
    %2 = arith.truncf %1 : vector<16x16xf32> to vector<16x16xbf16>
    %c0_1 = arith.constant 0 : index
    %c0_2 = arith.constant 0 : index
    %c0_3 = arith.constant 0 : index
    %3 = vector.load %arg2[%c0_1, %c0_2, %c0_3] : memref<2x16x16xbf16, #tpu.memory_space<vmem>>, vector<1x16x16xbf16>
    %4 = vector.shape_cast %3 : vector<1x16x16xbf16> to vector<16x16xbf16>
    %cst = arith.constant dense<0.000000e+00> : vector<16x16xf32>
    %5 = tpu.matmul %2, %4, %cst {dimension_numbers = #tpu.dot_dimension_numbers<[1], [0], [0], [1], [0, 0, 1, 1], [], []>} : vector<16x16xbf16>, vector<16x16xbf16>, vector<16x16xf32> -> vector<16x16xf32>
    %c0_4 = arith.constant 0 : index
    %c0_5 = arith.constant 0 : index
    %c0_6 = arith.constant 0 : index
    %6 = vector.load %arg3[%c0_4, %c0_5, %c0_6] : memref<2x1x16xf32, #tpu.memory_space<vmem>>, vector<1x1x16xf32>
    %7 = vector.shape_cast %6 : vector<1x1x16xf32> to vector<1x16xf32>
    %8 = vector.broadcast %7 : vector<1x16xf32> to vector<16x16xf32>
    %9 = arith.addf %5, %8 : vector<16x16xf32>
    %cst_7 = arith.constant 0.000000e+00 : f32
    %10 = vector.broadcast %cst_7 : f32 to vector<16x16xf32>
    %11 = arith.maximumf %9, %10 : vector<16x16xf32>
    %12 = arith.truncf %11 : vector<16x16xf32> to vector<16x16xbf16>
    %c0_8 = arith.constant 0 : index
    %c0_9 = arith.constant 0 : index
    %c0_10 = arith.constant 0 : index
    %13 = vector.load %arg4[%c0_8, %c0_9, %c0_10] : memref<2x16x16xbf16, #tpu.memory_space<vmem>>, vector<1x16x16xbf16>
    %14 = vector.shape_cast %13 : vector<1x16x16xbf16> to vector<16x16xbf16>
    %cst_11 = arith.constant dense<0.000000e+00> : vector<16x16xf32>
    %15 = tpu.matmul %12, %14, %cst_11 {dimension_numbers = #tpu.dot_dimension_numbers<[1], [0], [0], [1], [0, 0, 1, 1], [], []>} : vector<16x16xbf16>, vector<16x16xbf16>, vector<16x16xf32> -> vector<16x16xf32>
    %c0_12 = arith.constant 0 : index
    %c0_13 = arith.constant 0 : index
    %c0_14 = arith.constant 0 : index
    %16 = vector.load %arg5[%c0_12, %c0_13, %c0_14] : memref<2x1x16xf32, #tpu.memory_space<vmem>>, vector<1x1x16xf32>
    %17 = vector.shape_cast %16 : vector<1x1x16xf32> to vector<1x16xf32>
    %18 = vector.broadcast %17 : vector<1x16xf32> to vector<16x16xf32>
    %19 = arith.addf %15, %18 : vector<16x16xf32>
    %20 = arith.addf %19, %1 : vector<16x16xf32>
    %cst_15 = arith.constant 0.000000e+00 : f32
    %21 = vector.broadcast %cst_15 : f32 to vector<16x16xf32>
    %22 = arith.maximumf %20, %21 : vector<16x16xf32>
    %23 = arith.truncf %22 : vector<16x16xf32> to vector<16x16xbf16>
    %c1 = arith.constant 1 : index
    %c0_16 = arith.constant 0 : index
    %c0_17 = arith.constant 0 : index
    %24 = vector.load %arg2[%c1, %c0_16, %c0_17] : memref<2x16x16xbf16, #tpu.memory_space<vmem>>, vector<1x16x16xbf16>
    %25 = vector.shape_cast %24 : vector<1x16x16xbf16> to vector<16x16xbf16>
    %cst_18 = arith.constant dense<0.000000e+00> : vector<16x16xf32>
    %26 = tpu.matmul %23, %25, %cst_18 {dimension_numbers = #tpu.dot_dimension_numbers<[1], [0], [0], [1], [0, 0, 1, 1], [], []>} : vector<16x16xbf16>, vector<16x16xbf16>, vector<16x16xf32> -> vector<16x16xf32>
    %c1_19 = arith.constant 1 : index
    %c0_20 = arith.constant 0 : index
    %c0_21 = arith.constant 0 : index
    %27 = vector.load %arg3[%c1_19, %c0_20, %c0_21] : memref<2x1x16xf32, #tpu.memory_space<vmem>>, vector<1x1x16xf32>
    %28 = vector.shape_cast %27 : vector<1x1x16xf32> to vector<1x16xf32>
    %29 = vector.broadcast %28 : vector<1x16xf32> to vector<16x16xf32>
    %30 = arith.addf %26, %29 : vector<16x16xf32>
    %cst_22 = arith.constant 0.000000e+00 : f32
    %31 = vector.broadcast %cst_22 : f32 to vector<16x16xf32>
    %32 = arith.maximumf %30, %31 : vector<16x16xf32>
    %33 = arith.truncf %32 : vector<16x16xf32> to vector<16x16xbf16>
    %c1_23 = arith.constant 1 : index
    %c0_24 = arith.constant 0 : index
    %c0_25 = arith.constant 0 : index
    %34 = vector.load %arg4[%c1_23, %c0_24, %c0_25] : memref<2x16x16xbf16, #tpu.memory_space<vmem>>, vector<1x16x16xbf16>
    %35 = vector.shape_cast %34 : vector<1x16x16xbf16> to vector<16x16xbf16>
    %cst_26 = arith.constant dense<0.000000e+00> : vector<16x16xf32>
    %36 = tpu.matmul %33, %35, %cst_26 {dimension_numbers = #tpu.dot_dimension_numbers<[1], [0], [0], [1], [0, 0, 1, 1], [], []>} : vector<16x16xbf16>, vector<16x16xbf16>, vector<16x16xf32> -> vector<16x16xf32>
    %c1_27 = arith.constant 1 : index
    %c0_28 = arith.constant 0 : index
    %c0_29 = arith.constant 0 : index
    %37 = vector.load %arg5[%c1_27, %c0_28, %c0_29] : memref<2x1x16xf32, #tpu.memory_space<vmem>>, vector<1x1x16xf32>
    %38 = vector.shape_cast %37 : vector<1x1x16xf32> to vector<1x16xf32>
    %39 = vector.broadcast %38 : vector<1x16xf32> to vector<16x16xf32>
    %40 = arith.addf %36, %39 : vector<16x16xf32>
    %41 = arith.addf %40, %22 : vector<16x16xf32>
    %cst_30 = arith.constant 0.000000e+00 : f32
    %42 = vector.broadcast %cst_30 : f32 to vector<16x16xf32>
    %43 = arith.maximumf %41, %42 : vector<16x16xf32>
    %44 = arith.truncf %43 : vector<16x16xf32> to vector<16x16xbf16>
    %c0_31 = arith.constant 0 : index
    %c0_32 = arith.constant 0 : index
    %45 = vector.load %arg6[%c0_31, %c0_32] : memref<16x1xbf16, #tpu.memory_space<vmem>>, vector<16x1xbf16>
    %cst_33 = arith.constant dense<0.000000e+00> : vector<16x1xf32>
    %46 = tpu.matmul %44, %45, %cst_33 {dimension_numbers = #tpu.dot_dimension_numbers<[1], [0], [0], [1], [0, 0, 1, 1], [], []>} : vector<16x16xbf16>, vector<16x1xbf16>, vector<16x1xf32> -> vector<16x1xf32>
    %c0_34 = arith.constant 0 : index
    %c0_35 = arith.constant 0 : index
    %47 = memref.load %arg7[%c0_34, %c0_35] : memref<1x1xf32, #tpu.memory_space<smem>>
    %48 = vector.broadcast %47 : f32 to vector<16x1xf32>
    %49 = arith.addf %46, %48 : vector<16x1xf32>
    %50 = arith.negf %49 : vector<16x1xf32>
    %51 = math.exp %50 : vector<16x1xf32>
    %cst_36 = arith.constant 1.000000e+00 : f32
    %52 = vector.broadcast %cst_36 : f32 to vector<16x1xf32>
    %53 = arith.addf %52, %51 : vector<16x1xf32>
    %54 = arith.divf %52, %53 : vector<16x1xf32>
    %c0_37 = arith.constant 0 : index
    %c0_38 = arith.constant 0 : index
    %55 = vector.load %arg8[%c0_37, %c0_38] : memref<16x1xf32, #tpu.memory_space<vmem>>, vector<16x1xf32>
    tpu.vector_store %arg8[%c0_37, %c0_38], %54 {strides = array<i32>} : memref<16x1xf32, #tpu.memory_space<vmem>>, vector<16x1xf32>,
    return
  }
  func.func @transform_0(%arg0: i32) -> (i32, i32) {
    %c0_i32 = arith.constant 0 : i32
    %c0_i32_0 = arith.constant 0 : i32
    return %arg0, %c0_i32 : i32, i32
  }
  func.func @transform_1(%arg0: i32) -> (i32, i32, i32) {
    %c0_i32 = arith.constant 0 : i32
    %c0_i32_0 = arith.constant 0 : i32
    %c0_i32_1 = arith.constant 0 : i32
    %c0_i32_2 = arith.constant 0 : i32
    return %c0_i32, %c0_i32_0, %c0_i32_1 : i32, i32, i32
  }
  func.func @transform_2(%arg0: i32) -> (i32, i32, i32) {
    %c0_i32 = arith.constant 0 : i32
    %c0_i32_0 = arith.constant 0 : i32
    %c0_i32_1 = arith.constant 0 : i32
    %c0_i32_2 = arith.constant 0 : i32
    return %c0_i32, %c0_i32_0, %c0_i32_1 : i32, i32, i32
  }
  func.func @transform_3(%arg0: i32) -> (i32, i32, i32) {
    %c0_i32 = arith.constant 0 : i32
    %c0_i32_0 = arith.constant 0 : i32
    %c0_i32_1 = arith.constant 0 : i32
    %c0_i32_2 = arith.constant 0 : i32
    return %c0_i32, %c0_i32_0, %c0_i32_1 : i32, i32, i32
  }
  func.func @transform_4(%arg0: i32) -> (i32, i32, i32) {
    %c0_i32 = arith.constant 0 : i32
    %c0_i32_0 = arith.constant 0 : i32
    %c0_i32_1 = arith.constant 0 : i32
    %c0_i32_2 = arith.constant 0 : i32
    return %c0_i32, %c0_i32_0, %c0_i32_1 : i32, i32, i32
  }
  func.func @transform_5(%arg0: i32) -> (i32, i32) {
    %c0_i32 = arith.constant 0 : i32
    %c0_i32_0 = arith.constant 0 : i32
    %c0_i32_1 = arith.constant 0 : i32
    return %c0_i32, %c0_i32_0 : i32, i32
  }
  func.func @transform_6(%arg0: i32) -> (i32, i32) {
    %c0_i32 = arith.constant 0 : i32
    %c0_i32_0 = arith.constant 0 : i32
    %c0_i32_1 = arith.constant 0 : i32
    return %c0_i32, %c0_i32_0 : i32, i32
  }
  func.func @transform_7(%arg0: i32) -> (i32, i32) {
    %c0_i32 = arith.constant 0 : i32
    %c0_i32_0 = arith.constant 0 : i32
    return %arg0, %c0_i32 : i32, i32
  }
}

</mosaic_0001>

<llo_original>
// kernel: tpu_custom_call.1
$region0: #{tpu_custom_call.1}
  #allocation0 [shape = 'u32[]', space=smem, size = 0x4, offset = 0x4, fixed_abs, tag = 'smem constant byte address 0x4 - core index']
  #allocation1 [shape = 'u32[72,128]{1,0:T(1,128)}', space=vmem, size = 0x9000, scoped, tag = 'internal scratch']
  #allocation2 [shape = 'f32[1,1]{1,0:T(1,128)S(6)}', space=smem, size = 0x200, scoped, tag = 'scoped memory for tpu_custom_call.1']
  %s0 = inlined_call_operand.vmem [shape: bf16[32,16], index: 0, kind: input, shape index: {}]
  %s1 = inlined_call_operand.vmem [shape: bf16[2,16,16], index: 1, kind: input, shape index: {}]
  %s2 = inlined_call_operand.vmem [shape: f32[2,1,16], index: 2, kind: input, shape index: {}]
  %s3 = inlined_call_operand.vmem [shape: bf16[2,16,16], index: 3, kind: input, shape index: {}]
  %s4 = inlined_call_operand.vmem [shape: f32[2,1,16], index: 4, kind: input, shape index: {}]
  %s5 = inlined_call_operand.vmem [shape: bf16[16,1], index: 5, kind: input, shape index: {}]
  %s6 = inlined_call_operand.<no memory space> [shape: f32[1,1], index: 6, kind: input, shape index: {}]
  %s7 = inlined_call_operand.vmem [shape: f32[32,1], index: 7, kind: output, shape index: {}]
  %s8 = sld [smem:[#allocation0]]
  $region61: #{tpu_custom_call.1} parent=0
    _
  %s10 = ssub.s32 1, %s8
  %s11 = scalar_select 0, %s10, %s8
  %12 = sst [smem:[#allocation2]] %s6
  loop: start=0, step=1, limit=4
  $region2: #{tpu_custom_call.1} parent=0 // loop_pre_header
    _
  $region3: #{tpu_custom_call.1} parent=0 // loop_header
    %s14 = sphi 0, %s18
    %p15 = scmp.ge.s32.totalorder %s14, 4
    %s24 = sphi 0, %s26
    %s27 = sphi 0, %s24
    %s28 = sphi 0, %s27
    %s44 = sphi 0, %s28
    %s48 = sphi 0, %s48
    %s50 = sphi 0, %s48
    %s51 = sphi 0, %s50
    %s65 = sphi 0, %s51
    %s69 = sphi 0, %s69
    %s71 = sphi 0, %s69
    %s72 = sphi 0, %s71
    %s86 = sphi 0, %s72
    %s90 = sphi 0, %s90
    %s92 = sphi 0, %s90
    %s93 = sphi 0, %s92
    %s107 = sphi 0, %s93
    %s111 = sphi 0, %s111
    %s113 = sphi 0, %s111
    %s114 = sphi 0, %s113
    %s128 = sphi 0, %s114
    %s132 = sphi 0, %s132
    %s134 = sphi 0, %s132
    %s135 = sphi 0, %s134
    %s149 = sphi 0, %s135
    %s153 = sphi 0, %s153
    %s155 = sphi 0, %s153
    %s156 = sphi 0, %s155
    %s170 = sphi 0, %s156
    %s176 = sphi 0, %s178
    %s179 = sphi 0, %s176
    %s180 = sphi 0, %s179
    %s196 = sphi 0, %s180
  $region4: #{tpu_custom_call.1} parent=0 // loop_header_branch
    %17 = sbr.rel (%p15) target = $region8
  $region5: #{tpu_custom_call.1} parent=0 // loop_body
    %s19 = ssub.s32 %s14, 1
    %s20 = ssub.s32 %s14, 2
    %s21 = sadd.s32 %s14, 1
    %s22 = ssub.s32 %s14, %s21
    %p23 = scmp.eq.s32.totalorder %s22, 0
    %s25 = sadd.s32 %s24, 1
    %s26 = scalar_select %p23, %s24, %s25
    %p29 = pneg %p23
    %p30 = scmp.eq.s32.totalorder %s14, 1
    %p31 = por %p29, %p30
    %p32 = scmp.ne.s32.totalorder %s24, %s27
    %p33 = scmp.eq.s32.totalorder %s14, 0
    %p34 = por %p32, %p33
    %p35 = scmp.ne.s32.totalorder %s24, %s27
    %p36 = scmp.eq.s32.totalorder %s19, 1
    %p37 = por %p35, %p36
    %p38 = scmp.ne.s32.totalorder %s27, %s28
    %p39 = scmp.eq.s32.totalorder %s19, 0
    %p40 = por %p38, %p39
    %p41 = scmp.ne.s32.totalorder %s27, %s28
    %p42 = scmp.eq.s32.totalorder %s20, 1
    %p43 = por %p41, %p42
    %p45 = scmp.ne.s32.totalorder %s28, %s44
    %p46 = scmp.eq.s32.totalorder %s20, 0
    %p47 = por %p45, %p46
    %s49 = sadd.s32 %s48, 1
    %p52 = scmp.eq.s32.totalorder %s14, 1
    %p53 = scmp.ne.s32.totalorder %s48, %s50
    %p54 = scmp.eq.s32.totalorder %s14, 0
    %p55 = por %p53, %p54
    %p56 = scmp.ne.s32.totalorder %s48, %s50
    %p57 = scmp.eq.s32.totalorder %s19, 1
    %p58 = por %p56, %p57
    %p59 = scmp.ne.s32.totalorder %s50, %s51
    %p60 = scmp.eq.s32.totalorder %s19, 0
    %p61 = por %p59, %p60
    %p62 = scmp.ne.s32.totalorder %s50, %s51
    %p63 = scmp.eq.s32.totalorder %s20, 1
    %p64 = por %p62, %p63
    %p66 = scmp.ne.s32.totalorder %s51, %s65
    %p67 = scmp.eq.s32.totalorder %s20, 0
    %p68 = por %p66, %p67
    %s70 = sadd.s32 %s69, 1
    %p73 = scmp.eq.s32.totalorder %s14, 1
    %p74 = scmp.ne.s32.totalorder %s69, %s71
    %p75 = scmp.eq.s32.totalorder %s14, 0
    %p76 = por %p74, %p75
    %p77 = scmp.ne.s32.totalorder %s69, %s71
    %p78 = scmp.eq.s32.totalorder %s19, 1
    %p79 = por %p77, %p78
    %p80 = scmp.ne.s32.totalorder %s71, %s72
    %p81 = scmp.eq.s32.totalorder %s19, 0
    %p82 = por %p80, %p81
    %p83 = scmp.ne.s32.totalorder %s71, %s72
    %p84 = scmp.eq.s32.totalorder %s20, 1
    %p85 = por %p83, %p84
    %p87 = scmp.ne.s32.totalorder %s72, %s86
    %p88 = scmp.eq.s32.totalorder %s20, 0
    %p89 = por %p87, %p88
    %s91 = sadd.s32 %s90, 1
    %p94 = scmp.eq.s32.totalorder %s14, 1
    %p95 = scmp.ne.s32.totalorder %s90, %s92
    %p96 = scmp.eq.s32.totalorder %s14, 0
    %p97 = por %p95, %p96
    %p98 = scmp.ne.s32.totalorder %s90, %s92
    %p99 = scmp.eq.s32.totalorder %s19, 1
    %p100 = por %p98, %p99
    %p101 = scmp.ne.s32.totalorder %s92, %s93
    %p102 = scmp.eq.s32.totalorder %s19, 0
    %p103 = por %p101, %p102
    %p104 = scmp.ne.s32.totalorder %s92, %s93
    %p105 = scmp.eq.s32.totalorder %s20, 1
    %p106 = por %p104, %p105
    %p108 = scmp.ne.s32.totalorder %s93, %s107
    %p109 = scmp.eq.s32.totalorder %s20, 0
    %p110 = por %p108, %p109
    %s112 = sadd.s32 %s111, 1
    %p115 = scmp.eq.s32.totalorder %s14, 1
    %p116 = scmp.ne.s32.totalorder %s111, %s113
    %p117 = scmp.eq.s32.totalorder %s14, 0
    %p118 = por %p116, %p117
    %p119 = scmp.ne.s32.totalorder %s111, %s113
    %p120 = scmp.eq.s32.totalorder %s19, 1
    %p121 = por %p119, %p120
    %p122 = scmp.ne.s32.totalorder %s113, %s114
    %p123 = scmp.eq.s32.totalorder %s19, 0
    %p124 = por %p122, %p123
    %p125 = scmp.ne.s32.totalorder %s113, %s114
    %p126 = scmp.eq.s32.totalorder %s20, 1
    %p127 = por %p125, %p126
    %p129 = scmp.ne.s32.totalorder %s114, %s128
    %p130 = scmp.eq.s32.totalorder %s20, 0
    %p131 = por %p129, %p130
    %s133 = sadd.s32 %s132, 1
    %p136 = scmp.eq.s32.totalorder %s14, 1
    %p137 = scmp.ne.s32.totalorder %s132, %s134
    %p138 = scmp.eq.s32.totalorder %s14, 0
    %p139 = por %p137, %p138
    %p140 = scmp.ne.s32.totalorder %s132, %s134
    %p141 = scmp.eq.s32.totalorder %s19, 1
    %p142 = por %p140, %p141
    %p143 = scmp.ne.s32.totalorder %s134, %s135
    %p144 = scmp.eq.s32.totalorder %s19, 0
    %p145 = por %p143, %p144
    %p146 = scmp.ne.s32.totalorder %s134, %s135
    %p147 = scmp.eq.s32.totalorder %s20, 1
    %p148 = por %p146, %p147
    %p150 = scmp.ne.s32.totalorder %s135, %s149
    %p151 = scmp.eq.s32.totalorder %s20, 0
    %p152 = por %p150, %p151
    %s154 = sadd.s32 %s153, 1
    %p157 = scmp.eq.s32.totalorder %s14, 1
    %p158 = scmp.ne.s32.totalorder %s153, %s155
    %p159 = scmp.eq.s32.totalorder %s14, 0
    %p160 = por %p158, %p159
    %p161 = scmp.ne.s32.totalorder %s153, %s155
    %p162 = scmp.eq.s32.totalorder %s19, 1
    %p163 = por %p161, %p162
    %p164 = scmp.ne.s32.totalorder %s155, %s156
    %p165 = scmp.eq.s32.totalorder %s19, 0
    %p166 = por %p164, %p165
    %p167 = scmp.ne.s32.totalorder %s155, %s156
    %p168 = scmp.eq.s32.totalorder %s20, 1
    %p169 = por %p167, %p168
    %p171 = scmp.ne.s32.totalorder %s156, %s170
    %p172 = scmp.eq.s32.totalorder %s20, 0
    %p173 = por %p171, %p172
    %s174 = ssub.s32 %s14, %s21
    %p175 = scmp.eq.s32.totalorder %s174, 0
    %s177 = sadd.s32 %s176, 1
    %s178 = scalar_select %p175, %s176, %s177
    %p181 = pneg %p175
    %p182 = scmp.eq.s32.totalorder %s14, 1
    %p183 = por %p181, %p182
    %p184 = scmp.ne.s32.totalorder %s176, %s179
    %p185 = scmp.eq.s32.totalorder %s14, 0
    %p186 = por %p184, %p185
    %p187 = scmp.ne.s32.totalorder %s176, %s179
    %p188 = scmp.eq.s32.totalorder %s19, 1
    %p189 = por %p187, %p188
    %p190 = scmp.ne.s32.totalorder %s179, %s180
    %p191 = scmp.eq.s32.totalorder %s19, 0
    %p192 = por %p190, %p191
    %p193 = scmp.ne.s32.totalorder %s179, %s180
    %p194 = scmp.eq.s32.totalorder %s20, 1
    %p195 = por %p193, %p194
    %p197 = scmp.ne.s32.totalorder %s180, %s196
    %p198 = scmp.eq.s32.totalorder %s20, 0
    %p199 = por %p197, %p198
    %p200 = scmp.le.s32.totalorder 1, %s14
    %p201 = scmp.lt.s32.totalorder %s14, 3
    %p202 = pnand %p200, %p201
    %p203 = pneg %p202
    // Predicated region
    $region9: #{tpu_custom_call.1} parent=5 // pred_check
      _
    $region10: #{tpu_custom_call.1} parent=5 // pred_check_branch
      %205 = sbr.rel (%p202) target = $region12
    $region11: #{tpu_custom_call.1} parent=5 // pred_region
      %s206 = ssub.s32 %s14, 1
      // Predicated region
      $region13: #{tpu_custom_call.1} parent=11 // pred_check
        %p207 = pneg %p61
      $region14: #{tpu_custom_call.1} parent=11 // pred_check_branch
        %209 = sbr.rel (%p207) target = $region16
      $region15: #{tpu_custom_call.1} parent=11 // pred_region
        _
      $region16: #{tpu_custom_call.1} parent=11 // pred_fallthru
        _
      // Predicated region
      $region17: #{tpu_custom_call.1} parent=11 // pred_check
        %p210 = pneg %p82
      $region18: #{tpu_custom_call.1} parent=11 // pred_check_branch
        %212 = sbr.rel (%p210) target = $region20
      $region19: #{tpu_custom_call.1} parent=11 // pred_region
        _
      $region20: #{tpu_custom_call.1} parent=11 // pred_fallthru
        _
      // Predicated region
      $region21: #{tpu_custom_call.1} parent=11 // pred_check
        %p213 = pneg %p103
      $region22: #{tpu_custom_call.1} parent=11 // pred_check_branch
        %215 = sbr.rel (%p213) target = $region24
      $region23: #{tpu_custom_call.1} parent=11 // pred_region
        _
      $region24: #{tpu_custom_call.1} parent=11 // pred_fallthru
        _
      // Predicated region
      $region25: #{tpu_custom_call.1} parent=11 // pred_check
        %p216 = pneg %p124
      $region26: #{tpu_custom_call.1} parent=11 // pred_check_branch
        %218 = sbr.rel (%p216) target = $region28
      $region27: #{tpu_custom_call.1} parent=11 // pred_region
        _
      $region28: #{tpu_custom_call.1} parent=11 // pred_fallthru
        _
      // Predicated region
      $region29: #{tpu_custom_call.1} parent=11 // pred_check
        %p219 = pneg %p145
      $region30: #{tpu_custom_call.1} parent=11 // pred_check_branch
        %221 = sbr.rel (%p219) target = $region32
      $region31: #{tpu_custom_call.1} parent=11 // pred_region
        _
      $region32: #{tpu_custom_call.1} parent=11 // pred_fallthru
        _
      // Predicated region
      $region33: #{tpu_custom_call.1} parent=11 // pred_check
        %p222 = pneg %p166
      $region34: #{tpu_custom_call.1} parent=11 // pred_check_branch
        %224 = sbr.rel (%p222) target = $region36
      $region35: #{tpu_custom_call.1} parent=11 // pred_region
        _
      $region36: #{tpu_custom_call.1} parent=11 // pred_fallthru
        _
    $region12: #{tpu_custom_call.1} parent=5 // pred_fallthru
      _
    %p225 = scmp.lt.s32.totalorder %s14, 2
    // Predicated region
    $region37: #{tpu_custom_call.1} parent=5 // pred_check
      %p226 = pneg %p225
    $region38: #{tpu_custom_call.1} parent=5 // pred_check_branch
      %228 = sbr.rel (%p226) target = $region40
    $region39: #{tpu_custom_call.1} parent=5 // pred_region
      // Predicated region
      $region41: #{tpu_custom_call.1} parent=39 // pred_check
        %p229 = pneg %p34
      $region42: #{tpu_custom_call.1} parent=39 // pred_check_branch
        %231 = sbr.rel (%p229) target = $region44
      $region43: #{tpu_custom_call.1} parent=39 // pred_region
        %s232 = smul.u32 2, %s14
        %p233 = scmp.lt.s32.totalorder %s232, 3
        %s234 = scalar_select %p233, %s232, 3
        %s235 = smul.addr %s234, 4
        %s236 = scalar_lea.vmem %s0, %s235
        %s237 = smul.u32 2, %s14
      $region44: #{tpu_custom_call.1} parent=39 // pred_fallthru
        _
    $region40: #{tpu_custom_call.1} parent=5 // pred_fallthru
      _
    %p238 = scmp.le.s32.totalorder 1, %s14
    %p239 = scmp.lt.s32.totalorder %s14, 3
    %p240 = pnand %p238, %p239
    %p241 = pneg %p240
    // Predicated region
    $region45: #{tpu_custom_call.1} parent=5 // pred_check
      _
    $region46: #{tpu_custom_call.1} parent=5 // pred_check_branch
      %243 = sbr.rel (%p240) target = $region48
    $region47: #{tpu_custom_call.1} parent=5 // pred_region
      %s244 = ssub.s32 %s14, 1
      %s245 = smul.u32 2, %s19
      %p246 = scmp.lt.s32.totalorder %s245, 3
      %s247 = scalar_select %p246, %s245, 3
      %s248 = smul.addr %s247, 4
      %s249 = scalar_lea.vmem %s0, %s248
      %p250 = pneg %p40
      %p251 = pneg %p37
      %p252 = pneg %p61
      %p253 = pneg %p58
      %p254 = pneg %p82
      %p255 = pneg %p79
      %p256 = pneg %p103
      %p257 = pneg %p100
      %p258 = pneg %p124
      %p259 = pneg %p121
      %p260 = pneg %p145
      %p261 = pneg %p142
      %p262 = pneg %p166
      %p263 = pneg %p163
      %p264 = pneg %p192
      %p265 = pneg %p189
      %s266 = smul.u32 2, %s19
      %p267 = scmp.lt.s32.totalorder %s266, 3
      %s268 = scalar_select %p267, %s266, 3
      %s269 = smul.addr %s268, 8
      %s270 = scalar_lea.vmem %s7, %s269
      %s271 = smul.u32 2, %s19
      %p272 = scmp.lt.s32.totalorder %s271, 3
      %s273 = scalar_select %p272, %s271, 3
      %s274 = smul.addr %s273, 4
      %s275 = scalar_lea.vmem %s0, %s274
      %s276 = smul.u32 2, %s19
      %s277 = smul.u32 2, %s19
      %p278 = scmp.lt.s32.totalorder %s277, 3
      %s279 = scalar_select %p278, %s277, 3
      %s280 = smul.addr %s279, 8
      %s281 = scalar_lea.vmem %s7, %s280
      %s282 = smul.u32 2, %s19
      %v284 = vld [vmem:[%s275] sm:$0xf]
      %v285 = vld [vmem:[%s275 + $0x4] sm:$0xf]
      %v286 = vunpack.c.l.bf16 %v284
      %v287 = vunpack.c.l.bf16 %v285
      %v288 = vld [vmem:[%s1] sm:$0xf]
      %v289 = vld [vmem:[%s1 + $0x4] sm:$0xf]
      %v290 = vld [vmem:[%s2] sm:$0x1]
      %v292 = vperm.slane %v290, 0
      %v296 = vunpack.c.l.b16 %v284
      %v297 = vunpack.c.l.b16 %v285
      %v298 = vpack.c.b16 %v297, %v296
      %v301 = vunpack.c.l.b16 %v288
      %v302 = vunpack.c.l.b16 %v289
      %v303 = vpack.c.b16 %v302, %v301
      %vm305 = vcmask 130048
      %v307 = vsel %vm305, %v298, 0
      %309 = vmatpush.bf16.msra.mxu0 0
      %310 = vmatpush.bf16.msra.mxu0 0
      %311 = vmatpush.bf16.msra.mxu0 0
      %312 = vmatpush.bf16.msra.mxu0 0
      %313 = vmatpush.bf16.msra.mxu0 0
      %314 = vmatpush.bf16.msra.mxu0 0
      %315 = vmatpush.bf16.msra.mxu0 0
      %316 = vmatpush.bf16.msra.mxu0 %v303
      %317 = vmatmul.bf16.gmra.mxu0 %v307
      %v318 = vpop.f32.mrf.mxu0
      %v319 = vadd.f32 %v292, %v318
      %v320 = vpop.f32.mrf.mxu0
      %v321 = vadd.f32 %v292, %v320
      %322 = vdwg.mxu0
      %v323 = vmax.f32 %v319, 0.0
      %v324 = vmax.f32 %v321, 0.0
      %v325 = vpack.c.bf16 %v324, %v323
      %v326 = vld [vmem:[%s3] sm:$0xf]
      %v327 = vld [vmem:[%s3 + $0x4] sm:$0xf]
      %v328 = vld [vmem:[%s4] sm:$0x1]
      %v330 = vperm.slane %v328, 0
      %v334 = vunpack.c.l.b16 %v326
      %v335 = vunpack.c.l.b16 %v327
      %v336 = vpack.c.b16 %v335, %v334
      %v339 = vsel %vm305, %v325, 0
      %341 = vmatpush.bf16.msra.mxu0 0
      %342 = vmatpush.bf16.msra.mxu0 0
      %343 = vmatpush.bf16.msra.mxu0 0
      %344 = vmatpush.bf16.msra.mxu0 0
      %345 = vmatpush.bf16.msra.mxu0 0
      %346 = vmatpush.bf16.msra.mxu0 0
      %347 = vmatpush.bf16.msra.mxu0 0
      %348 = vmatpush.bf16.msra.mxu0 %v336
      %349 = vmatmul.bf16.gmra.mxu0 %v339
      %v350 = vpop.f32.mrf.mxu0
      %v351 = vadd.f32 %v330, %v350
      %v352 = vpop.f32.mrf.mxu0
      %v353 = vadd.f32 %v330, %v352
      %354 = vdwg.mxu0
      %v355 = vadd.f32 %v351, %v286
      %v356 = vadd.f32 %v353, %v287
      %v357 = vmax.f32 %v355, 0.0
      %v358 = vmax.f32 %v356, 0.0
      %v359 = vpack.c.bf16 %v358, %v357
      %s360 = scalar_lea.vmem %s1, 8
      %v361 = vld [vmem:[%s360] sm:$0xf]
      %v362 = vld [vmem:[%s360 + $0x4] sm:$0xf]
      %s363 = scalar_lea.vmem %s2, 1
      %v364 = vld [vmem:[%s363] sm:$0x1]
      %v366 = vperm.slane %v364, 0
      %v370 = vunpack.c.l.b16 %v361
      %v371 = vunpack.c.l.b16 %v362
      %v372 = vpack.c.b16 %v371, %v370
      %v375 = vsel %vm305, %v359, 0
      %377 = vmatpush.bf16.msra.mxu0 0
      %378 = vmatpush.bf16.msra.mxu0 0
      %379 = vmatpush.bf16.msra.mxu0 0
      %380 = vmatpush.bf16.msra.mxu0 0
      %381 = vmatpush.bf16.msra.mxu0 0
      %382 = vmatpush.bf16.msra.mxu0 0
      %383 = vmatpush.bf16.msra.mxu0 0
      %384 = vmatpush.bf16.msra.mxu0 %v372
      %385 = vmatmul.bf16.gmra.mxu0 %v375
      %v386 = vpop.f32.mrf.mxu0
      %v387 = vadd.f32 %v366, %v386
      %v388 = vpop.f32.mrf.mxu0
      %v389 = vadd.f32 %v366, %v388
      %390 = vdwg.mxu0
      %v391 = vmax.f32 %v387, 0.0
      %v392 = vmax.f32 %v389, 0.0
      %v393 = vpack.c.bf16 %v392, %v391
      %s394 = scalar_lea.vmem %s3, 8
      %v395 = vld [vmem:[%s394] sm:$0xf]
      %v396 = vld [vmem:[%s394 + $0x4] sm:$0xf]
      %s397 = scalar_lea.vmem %s4, 1
      %v398 = vld [vmem:[%s397] sm:$0x1]
      %v400 = vperm.slane %v398, 0
      %v404 = vunpack.c.l.b16 %v395
      %v405 = vunpack.c.l.b16 %v396
      %v406 = vpack.c.b16 %v405, %v404
      %v409 = vsel %vm305, %v393, 0
      %411 = vmatpush.bf16.msra.mxu0 0
      %412 = vmatpush.bf16.msra.mxu0 0
      %413 = vmatpush.bf16.msra.mxu0 0
      %414 = vmatpush.bf16.msra.mxu0 0
      %415 = vmatpush.bf16.msra.mxu0 0
      %416 = vmatpush.bf16.msra.mxu0 0
      %417 = vmatpush.bf16.msra.mxu0 0
      %418 = vmatpush.bf16.msra.mxu0 %v406
      %419 = vmatmul.bf16.gmra.mxu0 %v409
      %v420 = vpop.f32.mrf.mxu0
      %v421 = vadd.f32 %v400, %v420
      %v422 = vpop.f32.mrf.mxu0
      %v423 = vadd.f32 %v400, %v422
      %424 = vdwg.mxu0
      %v425 = vadd.f32 %v421, %v357
      %v426 = vadd.f32 %v423, %v358
      %v427 = vmax.f32 %v425, 0.0
      %v428 = vmax.f32 %v426, 0.0
      %v429 = vpack.c.bf16 %v428, %v427
      %v430 = vld [vmem:[%s5] sm:$0xf]
      %v431 = vld [vmem:[%s5 + $0x4] sm:$0xf]
      %s432 = sld [smem:[#allocation2]]
      %v433 = vstv %s432
      %v436 = vunpack.c.l.b16 %v430
      %v437 = vunpack.c.l.b16 %v431
      %v438 = vpack.c.b16 %v437, %v436
      %v441 = vsel %vm305, %v429, 0
      %443 = vmatpush.bf16.msra.mxu0 0
      %444 = vmatpush.bf16.msra.mxu0 0
      %445 = vmatpush.bf16.msra.mxu0 0
      %446 = vmatpush.bf16.msra.mxu0 0
      %447 = vmatpush.bf16.msra.mxu0 0
      %448 = vmatpush.bf16.msra.mxu0 0
      %449 = vmatpush.bf16.msra.mxu0 0
      %450 = vmatpush.bf16.msra.mxu0 %v438
      %451 = vmatmul.bf16.gmra.mxu0 %v441
      %v452 = vpop.f32.mrf.mxu0
      %v453 = vadd.f32 %v433, %v452
      %v454 = vpop.f32.mrf.mxu0
      %v455 = vadd.f32 %v433, %v454
      %456 = vdwg.mxu0
      %v457 = vxor.u32 %v453, 2147483648
      %v458 = vxor.u32 %v455, 2147483648
      %v459 = vmul.f32 %v457, 1.442695
      %v460 = vpow.pop %v459
      %v461 = vmul.f32 %v458, 1.442695
      %v462 = vpow.pop %v461
      %v463 = vadd.f32 %v460, 1.0
      %v464 = vadd.f32 %v462, 1.0
      %v465 = vrcp.pop %v463
      %v466 = vmul.f32 %v463, %v465
      %v467 = vsub.f32 1.0, %v466
      %v468 = vmul.f32 %v465, %v467
      %v469 = vadd.f32 %v465, %v468
      %vm470 = vweird.f32 %v463
      %vm471 = vweird.f32 %v465
      %vm472 = vmor %vm470, %vm471
      %v473 = vsel %vm472, %v465, %v469
      %v474 = vand.u32 2147483647, %v463
      %vm475 = vcmp.eq.f32.partialorder %v474, 8.507059e+37
      %v476 = vand.u32 %v463, 2147483648
      %v477 = vor.u32 1.1754944e-38, %v476
      %v478 = vsel %vm475, %v477, %v473
      %v479 = vmul.f32 1.0, %v478
      %v480 = vrcp.pop %v464
      %v481 = vmul.f32 %v464, %v480
      %v482 = vsub.f32 1.0, %v481
      %v483 = vmul.f32 %v480, %v482
      %v484 = vadd.f32 %v480, %v483
      %vm485 = vweird.f32 %v464
      %vm486 = vweird.f32 %v480
      %vm487 = vmor %vm485, %vm486
      %v488 = vsel %vm487, %v480, %v484
      %v489 = vand.u32 2147483647, %v464
      %vm490 = vcmp.eq.f32.partialorder %v489, 8.507059e+37
      %v491 = vand.u32 %v464, 2147483648
      %v492 = vor.u32 1.1754944e-38, %v491
      %v493 = vsel %vm490, %v492, %v488
      %v494 = vmul.f32 1.0, %v493
      %vm495 = vcmask 7168
      %496 = vst.msk [vmem:[%s281] sm:$0xff] %vm495, %v479
      %497 = vst.msk [vmem:[%s281 + $0x8] sm:$0xff] %vm495, %v494
      %s498 = smul.u32 2, %s19
      %p499 = scmp.lt.s32.totalorder %s498, 3
      %s500 = scalar_select %p499, %s498, 3
      %s501 = smul.addr %s500, 8
      %s502 = scalar_lea.vmem %s7, %s501
      // Predicated region
      $region49: #{tpu_custom_call.1} parent=47 // pred_check
        %p503 = pneg %p189
      $region50: #{tpu_custom_call.1} parent=47 // pred_check_branch
        %505 = sbr.rel (%p503) target = $region52
      $region51: #{tpu_custom_call.1} parent=47 // pred_region
        %s506 = smul.u32 2, %s19
      $region52: #{tpu_custom_call.1} parent=47 // pred_fallthru
        _
    $region48: #{tpu_custom_call.1} parent=5 // pred_fallthru
      _
    %p507 = scmp.le.s32.totalorder 2, %s14
    // Predicated region
    $region53: #{tpu_custom_call.1} parent=5 // pred_check
      %p508 = pneg %p507
    $region54: #{tpu_custom_call.1} parent=5 // pred_check_branch
      %510 = sbr.rel (%p508) target = $region56
    $region55: #{tpu_custom_call.1} parent=5 // pred_region
      %s511 = ssub.s32 %s14, 2
      // Predicated region
      $region57: #{tpu_custom_call.1} parent=55 // pred_check
        %p512 = pneg %p195
      $region58: #{tpu_custom_call.1} parent=55 // pred_check_branch
        %514 = sbr.rel (%p512) target = $region60
      $region59: #{tpu_custom_call.1} parent=55 // pred_region
        %s515 = smul.u32 2, %s20
        %p516 = scmp.lt.s32.totalorder %s515, 3
        %s517 = scalar_select %p516, %s515, 3
        %s518 = smul.addr %s517, 8
        %s519 = scalar_lea.vmem %s7, %s518
      $region60: #{tpu_custom_call.1} parent=55 // pred_fallthru
        _
    $region56: #{tpu_custom_call.1} parent=5 // pred_fallthru
      _
  $region6: #{tpu_custom_call.1} parent=0 // loop_footer
    %s18 = sadd.s32 1, %s14
  $region7: #{tpu_custom_call.1} parent=0 // loop_footer_branch
    %13 = sbr.rel target = $region3
  $region8: #{tpu_custom_call.1} parent=0 // loop_exit
    _

</llo_original>
